<compile_context>
chip_gen: v6e
topology: v6e:2x2x1
jax: 0.10.0
libtpu: 0.0.40
codegen_flags: <defaults>
</compile_context>

<pallas_src>
import jax
import jax.numpy as jnp
from jax.experimental import pallas as pl
from jax.experimental.pallas import tpu as pltpu

IN_DIM = 16 * 5 * 5              # 400
H1, H2, OUT_DIM = 64, 32, 10
NPAD = 128                       # lane-dense padded width for every layer output
W_ROWS = IN_DIM + NPAD + NPAD    # 656 rows of the concatenated weight slab
TM_MAX = 1024                    # max batch-tile rows (review: 1024-2048)
TM_MIN_SPLIT = 128               # split batch into >=2 tiles only if tiles stay big


# ----------------------------------------------------------------------------
# Fused MLP kernel: one batch tile, all three layers, weights resident in VMEM.
# ----------------------------------------------------------------------------
def _mlp_kernel(x_ref, w_ref, b_ref, o_ref):
    """x_ref : (tm, 400)  input tile
       w_ref : (656, 128) f32  = [w1 (400,128) ; w2 (128,128) ; w3 (128,128)]
       b_ref : (3, 128)   f32  rows = b1, b2, b3 (padded lanes are zero)
       o_ref : (tm, 128)  bf16 lane-dense output (cols >= 10 are padding)."""
    x = x_ref[...].astype(jnp.float32)          # no-op when x is already f32
    b = b_ref[...]

    # fc1 + ReLU  (f32 matmul: MXU is idle in this HBM-bound kernel -> free)
    h = jnp.dot(x, w_ref[0:IN_DIM, :], preferred_element_type=jnp.float32)
    h = jnp.maximum(h + b[0:1, :], 0.0)

    # fc2 + ReLU  (padded hidden cols are exactly zero -> no effect)
    h = jnp.dot(h, w_ref[IN_DIM:IN_DIM + NPAD, :],
                preferred_element_type=jnp.float32)
    h = jnp.maximum(h + b[1:2, :], 0.0)

    # fc3 (no activation); lane-dense (tm, 128) bf16 store, sliced to 10 outside.
    h = jnp.dot(h, w_ref[IN_DIM + NPAD:W_ROWS, :],
                preferred_element_type=jnp.float32)
    o_ref[...] = (h + b[2:3, :]).astype(o_ref.dtype)


# ----------------------------------------------------------------------------
# Parameter init (PyTorch nn.Linear layout + init) and one-time kernel repack.
# ----------------------------------------------------------------------------
def init_params(key):
    ks = jax.random.split(key, 6)

    def u(k, shape, fan_in):
        bound = 1.0 / jnp.sqrt(jnp.float32(fan_in))
        return jax.random.uniform(k, shape, jnp.float32, -bound, bound)

    return {
        "fc1_w": u(ks[0], (H1, IN_DIM), IN_DIM),   # (out, in) like PyTorch
        "fc1_b": u(ks[1], (H1,), IN_DIM),
        "fc2_w": u(ks[2], (H2, H1), H1),
        "fc2_b": u(ks[3], (H2,), H1),
        "fc3_w": u(ks[4], (OUT_DIM, H2), H2),
        "fc3_b": u(ks[5], (OUT_DIM,), H2),
    }


def prepare_params(params):
    """One-time repack to kernel-facing layout:
       * transpose PyTorch (out,in) weights to (in,out),
       * zero-pad every layer's output dim (and fc2/fc3 input dims) to 128,
       * concatenate the 3 weights into a single (656,128) f32 slab and the
         3 biases into a single (3,128) f32 slab (2 resident VMEM operands)."""
    def pad_w(w_pt, k_in):
        out_dim, in_dim = w_pt.shape
        w = jnp.zeros((k_in, NPAD), jnp.float32)
        return w.at[:in_dim, :out_dim].set(w_pt.astype(jnp.float32).T)

    def pad_b(b_pt):
        b = jnp.zeros((NPAD,), jnp.float32)
        return b.at[: b_pt.shape[0]].set(b_pt.astype(jnp.float32))

    w_all = jnp.concatenate(
        [pad_w(params["fc1_w"], IN_DIM),      # (400, 128)
         pad_w(params["fc2_w"], NPAD),        # (128, 128)
         pad_w(params["fc3_w"], NPAD)],       # (128, 128)
        axis=0)                               # -> (656, 128)

    b_all = jnp.stack([pad_b(params["fc1_b"]),
                       pad_b(params["fc2_b"]),
                       pad_b(params["fc3_b"])], axis=0)   # (3, 128)
    return {"w": w_all, "b": b_all}


# ----------------------------------------------------------------------------
# Forward
# ----------------------------------------------------------------------------
def _round_up(x, m):
    return ((x + m - 1) // m) * m


def _choose_tm(B):
    # Big tiles amortize the ~0.35 us per-grid-step overhead (85%+ of HBM
    # roofline needs >= 512-row tiles); cap keeps VMEM small.
    tm = min(TM_MAX, _round_up(B, 8))
    # Give the "parallel" grid >= 2 steps (v7x has 2 TensorCores per chip)
    # whenever each resulting tile stays big enough to remain efficient.
    half = _round_up((B + 1) // 2, 8)
    if half >= TM_MIN_SPLIT:
        tm = min(tm, half)
    return max(tm, 8)


@jax.jit
def smallcnn_forward_padded(x, kp):
    """Fused forward.  Returns the lane-dense (B, 128) bf16 slab (cols >= 10
    are padding).  Prefer this entry point when the consumer can slice/fuse
    downstream -- it avoids an extra HBM pass over the output."""
    B = x.shape[0]
    xf = x.reshape(B, -1)                      # x.view(x.size(0), -1)
    assert xf.shape[1] == IN_DIM
    # NOTE: no standalone f32->bf16 cast pass here; feed bf16 x only if the
    # upstream producer already emits it (that halves the dominant x DMA term).

    tm = _choose_tm(B)
    grid = (pl.cdiv(B, tm),)   # ragged last block handled by Pallas; no jnp.pad

    flops = 2 * B * (IN_DIM * NPAD + 2 * NPAD * NPAD)
    bytes_accessed = (B * IN_DIM * xf.dtype.itemsize       # x read
                      + B * NPAD * 2                        # bf16 output write
                      + W_ROWS * NPAD * 4 + 3 * NPAD * 4)   # resident weights/bias

    return pl.pallas_call(
        _mlp_kernel,
        out_shape=jax.ShapeDtypeStruct((B, NPAD), jnp.bfloat16),
        grid=grid,
        in_specs=[
            pl.BlockSpec((tm, IN_DIM), lambda i: (i, 0)),     # x batch tile
            pl.BlockSpec((W_ROWS, NPAD), lambda i: (0, 0)),   # all weights (resident)
            pl.BlockSpec((3, NPAD), lambda i: (0, 0)),        # all biases (resident)
        ],
        out_specs=pl.BlockSpec((tm, NPAD), lambda i: (i, 0)),
        compiler_params=pltpu.CompilerParams(
            dimension_semantics=("parallel",),
            vmem_limit_bytes=32 * 1024 * 1024,
        ),
        cost_estimate=pl.CostEstimate(
            flops=flops, transcendentals=0, bytes_accessed=bytes_accessed),
    )(xf, kp["w"], kp["b"])


@jax.jit
def smallcnn_forward(x, kp):
    """Module-faithful output: (B, 10) f32 logits (adds one slice/cast pass)."""
    return smallcnn_forward_padded(x, kp)[:, :OUT_DIM].astype(jnp.float32)


if __name__ == "__main__":
    key = jax.random.PRNGKey(0)
    k_in, k_par = jax.random.split(key)
    # Input whose flattened feature size is 16*5*5 = 400, as the module implies.
    x = jax.random.normal(k_in, (2, 16, 5, 5), jnp.float32)
    params = init_params(k_par)
    kparams = prepare_params(params)          # one-time kernel-facing repack

    out = smallcnn_forward(x, kparams)
    out = jax.block_until_ready(out)
    assert out.shape == (2, 10) and out.dtype == jnp.float32

    # Pure-JAX reference (PyTorch semantics); loose tol for the bf16 writeback.
    xf = x.reshape(2, -1)
    ref = jnp.maximum(xf @ params["fc1_w"].T + params["fc1_b"], 0.0)
    ref = jnp.maximum(ref @ params["fc2_w"].T + params["fc2_b"], 0.0)
    ref = ref @ params["fc3_w"].T + params["fc3_b"]
    assert jnp.allclose(out, ref, atol=5e-2, rtol=5e-2)

    print("KERNEL_OK")
</pallas_src>

<mosaic_0001>
module attributes {stable_mosaic.version = 11 : i64} {
  func.func @_mlp_kernel(%arg0: i32, %arg1: memref<8x400xf32, #tpu.memory_space<vmem>>, %arg2: memref<656x128xf32, #tpu.memory_space<vmem>>, %arg3: memref<3x128xf32, #tpu.memory_space<vmem>>, %arg4: memref<8x128xbf16, #tpu.memory_space<vmem>>) attributes {dimension_semantics = [#tpu.dimension_semantics<parallel>], iteration_bounds = array<i64: 1>, scalar_prefetch = 0 : i64, scratch_operands = 0 : i64, tpu.core_type = #tpu.core_type<tc>, window_params = [{transform_indices = @transform_0, window_bounds = array<i64: 8, 400>}, {pipeline_mode = #tpu.pipeline_mode<synchronous>, transform_indices = @transform_1, window_bounds = array<i64: 656, 128>}, {pipeline_mode = #tpu.pipeline_mode<synchronous>, transform_indices = @transform_2, window_bounds = array<i64: 3, 128>}, {transform_indices = @transform_3, window_bounds = array<i64: 8, 128>}]} {
    %c0 = arith.constant 0 : index
    %c0_0 = arith.constant 0 : index
    %0 = vector.load %arg1[%c0, %c0_0] : memref<8x400xf32, #tpu.memory_space<vmem>>, vector<8x400xf32>
    %c0_1 = arith.constant 0 : index
    %c0_2 = arith.constant 0 : index
    %1 = vector.load %arg3[%c0_1, %c0_2] : memref<3x128xf32, #tpu.memory_space<vmem>>, vector<3x128xf32>
    %c0_3 = arith.constant 0 : index
    %c0_4 = arith.constant 0 : index
    %2 = vector.load %arg2[%c0_3, %c0_4] : memref<656x128xf32, #tpu.memory_space<vmem>>, vector<400x128xf32>
    %cst = arith.constant dense<0.000000e+00> : vector<8x128xf32>
    %3 = tpu.matmul %0, %2, %cst {dimension_numbers = #tpu.dot_dimension_numbers<[1], [0], [0], [1], [0, 0, 1, 1], [], []>} : vector<8x400xf32>, vector<400x128xf32>, vector<8x128xf32> -> vector<8x128xf32>
    %4 = vector.extract_strided_slice %1 {offsets = [0, 0], sizes = [1, 128], strides = [1, 1]} : vector<3x128xf32> to vector<1x128xf32>
    %5 = vector.broadcast %4 : vector<1x128xf32> to vector<8x128xf32>
    %6 = arith.addf %3, %5 : vector<8x128xf32>
    %cst_5 = arith.constant 0.000000e+00 : f32
    %7 = vector.broadcast %cst_5 : f32 to vector<8x128xf32>
    %8 = arith.maximumf %6, %7 : vector<8x128xf32>
    %c400 = arith.constant 400 : index
    %c0_6 = arith.constant 0 : index
    %9 = vector.load %arg2[%c400, %c0_6] : memref<656x128xf32, #tpu.memory_space<vmem>>, vector<128x128xf32>
    %cst_7 = arith.constant dense<0.000000e+00> : vector<8x128xf32>
    %10 = tpu.matmul %8, %9, %cst_7 {dimension_numbers = #tpu.dot_dimension_numbers<[1], [0], [0], [1], [0, 0, 1, 1], [], []>} : vector<8x128xf32>, vector<128x128xf32>, vector<8x128xf32> -> vector<8x128xf32>
    %11 = vector.extract_strided_slice %1 {offsets = [1, 0], sizes = [1, 128], strides = [1, 1]} : vector<3x128xf32> to vector<1x128xf32>
    %12 = vector.broadcast %11 : vector<1x128xf32> to vector<8x128xf32>
    %13 = arith.addf %10, %12 : vector<8x128xf32>
    %cst_8 = arith.constant 0.000000e+00 : f32
    %14 = vector.broadcast %cst_8 : f32 to vector<8x128xf32>
    %15 = arith.maximumf %13, %14 : vector<8x128xf32>
    %c528 = arith.constant 528 : index
    %c0_9 = arith.constant 0 : index
    %16 = vector.load %arg2[%c528, %c0_9] : memref<656x128xf32, #tpu.memory_space<vmem>>, vector<128x128xf32>
    %cst_10 = arith.constant dense<0.000000e+00> : vector<8x128xf32>
    %17 = tpu.matmul %15, %16, %cst_10 {dimension_numbers = #tpu.dot_dimension_numbers<[1], [0], [0], [1], [0, 0, 1, 1], [], []>} : vector<8x128xf32>, vector<128x128xf32>, vector<8x128xf32> -> vector<8x128xf32>
    %18 = vector.extract_strided_slice %1 {offsets = [2, 0], sizes = [1, 128], strides = [1, 1]} : vector<3x128xf32> to vector<1x128xf32>
    %19 = vector.broadcast %18 : vector<1x128xf32> to vector<8x128xf32>
    %20 = arith.addf %17, %19 : vector<8x128xf32>
    %21 = arith.truncf %20 : vector<8x128xf32> to vector<8x128xbf16>
    %c0_11 = arith.constant 0 : index
    %c0_12 = arith.constant 0 : index
    %22 = vector.load %arg4[%c0_11, %c0_12] : memref<8x128xbf16, #tpu.memory_space<vmem>>, vector<8x128xbf16>
    tpu.vector_store %arg4[%c0_11, %c0_12], %21 {strides = array<i32>} : memref<8x128xbf16, #tpu.memory_space<vmem>>, vector<8x128xbf16>,
    return
  }
  func.func @transform_0(%arg0: i32) -> (i32, i32) {
    %c0_i32 = arith.constant 0 : i32
    %c0_i32_0 = arith.constant 0 : i32
    return %arg0, %c0_i32 : i32, i32
  }
  func.func @transform_1(%arg0: i32) -> (i32, i32) {
    %c0_i32 = arith.constant 0 : i32
    %c0_i32_0 = arith.constant 0 : i32
    %c0_i32_1 = arith.constant 0 : i32
    return %c0_i32, %c0_i32_0 : i32, i32
  }
  func.func @transform_2(%arg0: i32) -> (i32, i32) {
    %c0_i32 = arith.constant 0 : i32
    %c0_i32_0 = arith.constant 0 : i32
    %c0_i32_1 = arith.constant 0 : i32
    return %c0_i32, %c0_i32_0 : i32, i32
  }
  func.func @transform_3(%arg0: i32) -> (i32, i32) {
    %c0_i32 = arith.constant 0 : i32
    %c0_i32_0 = arith.constant 0 : i32
    return %arg0, %c0_i32 : i32, i32
  }
}

</mosaic_0001>

<llo_original>
// kernel: smallcnn_forward_padded.1
$region0: #{smallcnn_forward_padded.1}
  #allocation0 [shape = 'u32[]', space=smem, size = 0x4, offset = 0x4, fixed_abs, tag = 'smem constant byte address 0x4 - core index']
  #allocation1 [shape = 'u32[144,128]{1,0:T(1,128)}', space=vmem, size = 0x12000, scoped, tag = 'internal scratch']
  %s0 = inlined_call_operand.vmem [shape: f32[2,400], index: 0, kind: input, shape index: {}]
  %s1 = inlined_call_operand.hbm [shape: f32[656,128], index: 1, kind: input, shape index: {}]
  %s2 = inlined_call_operand.vmem [shape: f32[3,128], index: 2, kind: input, shape index: {}]
  %s3 = inlined_call_operand.hbm [shape: bf16[2,128], index: 3, kind: output, shape index: {}]
  %s4 = sld [smem:[#allocation0]]
  $region26: #{smallcnn_forward_padded.1} parent=0
    _
  %s6 = ssub.s32 1, %s4
  %s7 = scalar_select 0, %s6, %s4
  $region1: #{smallcnn_forward_padded.1} parent=0
    #allocation2 [shape = 'u8[335872]{0}', space=vmem, size = 0x52000, scoped, tag = 'input window, operand 1, single buffered']
    #allocation3 [shape = 's32[1]{0}', space=sflag, size = 0x4, scoped, tag = 'scoped memory for smallcnn_forward_padded.1']
    #allocation4 [shape = 's32[1]{0}', space=sflag, size = 0x4, scoped, tag = 'scoped memory for smallcnn_forward_padded.1']
    #allocation5 [shape = 'u8[2048]{0}', space=vmem, size = 0x800, scoped, tag = 'output window, operand 0, single buffered']
    %8 = vsyncpa [#allocation3], 0
    %9 = vsyncpa [#allocation4], 0
    // Predicated region
    $region2: #{smallcnn_forward_padded.1} parent=1 // pred_check
      _
    $region3: #{smallcnn_forward_padded.1} parent=1 // pred_check_branch
      %11 = sbr.rel (0) target = $region5
    $region4: #{smallcnn_forward_padded.1} parent=1 // pred_region
      _
    $region5: #{smallcnn_forward_padded.1} parent=1 // pred_fallthru
      _
    // Predicated region
    $region6: #{smallcnn_forward_padded.1} parent=1 // pred_check
      _
    $region7: #{smallcnn_forward_padded.1} parent=1 // pred_check_branch
      %13 = sbr.rel (0) target = $region9
    $region8: #{smallcnn_forward_padded.1} parent=1 // pred_region
      %s15 = ssub.s32 10496, 10496
      %16 = vsyncadd [#allocation3], %s15
      %s17 = sshll.u32 [#allocation2], 4
      %s18 = int_to_ptr.vmem [resolvable:$true] %s17
      %23 = dma.hbm_to_vmem [thread:$0]  %s1, 10496, %s18, [#allocation3], 128, 128, 8
    $region9: #{smallcnn_forward_padded.1} parent=1 // pred_fallthru
      _
    // Predicated region
    $region10: #{smallcnn_forward_padded.1} parent=1 // pred_check
      _
    $region11: #{smallcnn_forward_padded.1} parent=1 // pred_check_branch
      %25 = sbr.rel (0) target = $region13
    $region12: #{smallcnn_forward_padded.1} parent=1 // pred_region
      _
    $region13: #{smallcnn_forward_padded.1} parent=1 // pred_fallthru
      _
    // Predicated region
    $region14: #{smallcnn_forward_padded.1} parent=1 // pred_check
      _
    $region15: #{smallcnn_forward_padded.1} parent=1 // pred_check_branch
      %27 = sbr.rel (0) target = $region17
    $region16: #{smallcnn_forward_padded.1} parent=1 // pred_region
      %28 = dma.done [#allocation3], 10496
    $region17: #{smallcnn_forward_padded.1} parent=1 // pred_fallthru
      _
    %v29 = vld [vmem:[%s0] sm:$0xff]
    %v30 = vld [vmem:[%s0 + $0x8] sm:$0xff]
    %v31 = vld [vmem:[%s0 + $0x10] sm:$0xff]
    %v32 = vld [vmem:[%s0 + $0x18] sm:$0xff]
    %v33 = vld [vmem:[%s2] sm:$0x7]
    %v34 = vld [vmem:[#allocation2] sm:$0xff]
    %v35 = vld [vmem:[#allocation2 + $0x8] sm:$0xff]
    %v36 = vld [vmem:[#allocation2 + $0x10] sm:$0xff]
    %v37 = vld [vmem:[#allocation2 + $0x18] sm:$0xff]
    %v38 = vld [vmem:[#allocation2 + $0x20] sm:$0xff]
    %v39 = vld [vmem:[#allocation2 + $0x28] sm:$0xff]
    %v40 = vld [vmem:[#allocation2 + $0x30] sm:$0xff]
    %v41 = vld [vmem:[#allocation2 + $0x38] sm:$0xff]
    %v42 = vld [vmem:[#allocation2 + $0x40] sm:$0xff]
    %v43 = vld [vmem:[#allocation2 + $0x48] sm:$0xff]
    %v44 = vld [vmem:[#allocation2 + $0x50] sm:$0xff]
    %v45 = vld [vmem:[#allocation2 + $0x58] sm:$0xff]
    %v46 = vld [vmem:[#allocation2 + $0x60] sm:$0xff]
    %v47 = vld [vmem:[#allocation2 + $0x68] sm:$0xff]
    %v48 = vld [vmem:[#allocation2 + $0x70] sm:$0xff]
    %v49 = vld [vmem:[#allocation2 + $0x78] sm:$0xff]
    %v50 = vld [vmem:[#allocation2 + $0x80] sm:$0xff]
    %v51 = vld [vmem:[#allocation2 + $0x88] sm:$0xff]
    %v52 = vld [vmem:[#allocation2 + $0x90] sm:$0xff]
    %v53 = vld [vmem:[#allocation2 + $0x98] sm:$0xff]
    %v54 = vld [vmem:[#allocation2 + $0xa0] sm:$0xff]
    %v55 = vld [vmem:[#allocation2 + $0xa8] sm:$0xff]
    %v56 = vld [vmem:[#allocation2 + $0xb0] sm:$0xff]
    %v57 = vld [vmem:[#allocation2 + $0xb8] sm:$0xff]
    %v58 = vld [vmem:[#allocation2 + $0xc0] sm:$0xff]
    %v59 = vld [vmem:[#allocation2 + $0xc8] sm:$0xff]
    %v60 = vld [vmem:[#allocation2 + $0xd0] sm:$0xff]
    %v61 = vld [vmem:[#allocation2 + $0xd8] sm:$0xff]
    %v62 = vld [vmem:[#allocation2 + $0xe0] sm:$0xff]
    %v63 = vld [vmem:[#allocation2 + $0xe8] sm:$0xff]
    %v64 = vld [vmem:[#allocation2 + $0xf0] sm:$0xff]
    %v65 = vld [vmem:[#allocation2 + $0xf8] sm:$0xff]
    %v66 = vld [vmem:[#allocation2 + $0x100] sm:$0xff]
    %v67 = vld [vmem:[#allocation2 + $0x108] sm:$0xff]
    %v68 = vld [vmem:[#allocation2 + $0x110] sm:$0xff]
    %v69 = vld [vmem:[#allocation2 + $0x118] sm:$0xff]
    %v70 = vld [vmem:[#allocation2 + $0x120] sm:$0xff]
    %v71 = vld [vmem:[#allocation2 + $0x128] sm:$0xff]
    %v72 = vld [vmem:[#allocation2 + $0x130] sm:$0xff]
    %v73 = vld [vmem:[#allocation2 + $0x138] sm:$0xff]
    %v74 = vld [vmem:[#allocation2 + $0x140] sm:$0xff]
    %v75 = vld [vmem:[#allocation2 + $0x148] sm:$0xff]
    %v76 = vld [vmem:[#allocation2 + $0x150] sm:$0xff]
    %v77 = vld [vmem:[#allocation2 + $0x158] sm:$0xff]
    %v78 = vld [vmem:[#allocation2 + $0x160] sm:$0xff]
    %v79 = vld [vmem:[#allocation2 + $0x168] sm:$0xff]
    %v80 = vld [vmem:[#allocation2 + $0x170] sm:$0xff]
    %v81 = vld [vmem:[#allocation2 + $0x178] sm:$0xff]
    %v82 = vld [vmem:[#allocation2 + $0x180] sm:$0xff]
    %v83 = vld [vmem:[#allocation2 + $0x188] sm:$0xff]
    %v84 = vlaneseq
    %v85 = vshrl.u32 %v84, 7
    %v86 = vsub.s32 0, %v85
    %v87 = vrot.slane %v33, %v86
    %v92 = vcombine.low %v29, %v30
    %v93 = vcombine.high %v29, %v30
    %v94 = vcombine.low %v31, %v32
    %v95 = vcombine.high %v31, %v32
    %v97 = vunpack.c.l.s4 1983009808
    %v98 = vunpack.c.0.s8 %v97
    %v99 = vlaneseq
    %v100 = vshrl.u32 %v99, 7
    %v101 = vsub.s32 %v98, %v100
    %v102 = vrot.slane %v92, %v101
    %v104 = vunpack.c.l.s4 1983009808
    %v105 = vunpack.c.0.s8 %v104
    %v106 = vlaneseq
    %v107 = vshrl.u32 %v106, 7
    %v108 = vsub.s32 %v105, %v107
    %v109 = vrot.slane %v93, %v108
    %v111 = vunpack.c.l.s4 1983009808
    %v112 = vunpack.c.0.s8 %v111
    %v113 = vlaneseq
    %v114 = vshrl.u32 %v113, 7
    %v115 = vsub.s32 %v112, %v114
    %v116 = vrot.slane %v94, %v115
    %v118 = vunpack.c.l.s4 1983009808
    %v119 = vunpack.c.0.s8 %v118
    %v120 = vlaneseq
    %v121 = vshrl.u32 %v120, 7
    %v122 = vsub.s32 %v119, %v121
    %v123 = vrot.slane %v95, %v122
    %v124 = vcombine.low %v102, %v116
    %v125 = vcombine.high %v102, %v116
    %v126 = vcombine.low %v109, %v123
    %v127 = vcombine.high %v109, %v123
    %vm131 = vcmask 130048
    %v132 = vsel %vm131, %v127, 0
    %134 = vmatprep.subr.mxu0 0.0
    %135 = vmatpush1.msra.mxu0 %v49
    %136 = vmatprep.subr.mxu0 0.0
    %137 = vmatpush1.msra.mxu0 %v48
    %138 = vmatprep.subr.mxu0 0.0
    %139 = vmatpush1.msra.mxu0 %v47
    %140 = vmatprep.subr.mxu0 0.0
    %141 = vmatpush1.msra.mxu0 %v46
    %142 = vmatprep.subr.mxu0 0.0
    %143 = vmatpush1.msra.mxu0 %v45
    %144 = vmatprep.subr.mxu0 0.0
    %145 = vmatpush1.msra.mxu0 %v44
    %146 = vmatprep.subr.mxu0 0.0
    %147 = vmatpush1.msra.mxu0 %v43
    %148 = vmatprep.subr.mxu0 0.0
    %149 = vmatpush1.msra.mxu0 %v42
    %150 = vmatprep.subr.mxu0 0.0
    %151 = vmatpush1.msra.mxu0 %v41
    %152 = vmatprep.subr.mxu0 0.0
    %153 = vmatpush1.msra.mxu0 %v40
    %154 = vmatprep.subr.mxu0 0.0
    %155 = vmatpush1.msra.mxu0 %v39
    %156 = vmatprep.subr.mxu0 0.0
    %157 = vmatpush1.msra.mxu0 %v38
    %158 = vmatprep.subr.mxu0 0.0
    %159 = vmatpush1.msra.mxu0 %v37
    %160 = vmatprep.subr.mxu0 0.0
    %161 = vmatpush1.msra.mxu0 %v36
    %162 = vmatprep.subr.mxu0 0.0
    %163 = vmatpush1.msra.mxu0 %v35
    %164 = vmatprep.subr.mxu0 0.0
    %165 = vmatpush1.msra.mxu0 %v34
    %166 = vmatprep.subr.mxu0 0.0
    %167 = vmatpush2.msra.mxu0 %v65
    %168 = vmatprep.subr.mxu0 0.0
    %169 = vmatpush2.msra.mxu0 %v64
    %170 = vmatprep.subr.mxu0 0.0
    %171 = vmatpush2.msra.mxu0 %v63
    %172 = vmatprep.subr.mxu0 0.0
    %173 = vmatpush2.msra.mxu0 %v62
    %174 = vmatprep.subr.mxu0 0.0
    %175 = vmatpush2.msra.mxu0 %v61
    %176 = vmatprep.subr.mxu0 0.0
    %177 = vmatpush2.msra.mxu0 %v60
    %178 = vmatprep.subr.mxu0 0.0
    %179 = vmatpush2.msra.mxu0 %v59
    %180 = vmatprep.subr.mxu0 0.0
    %181 = vmatpush2.msra.mxu0 %v58
    %182 = vmatprep.subr.mxu0 0.0
    %183 = vmatpush2.msra.mxu0 %v57
    %184 = vmatprep.subr.mxu0 0.0
    %185 = vmatpush2.msra.mxu0 %v56
    %186 = vmatprep.subr.mxu0 0.0
    %187 = vmatpush2.msra.mxu0 %v55
    %188 = vmatprep.subr.mxu0 0.0
    %189 = vmatpush2.msra.mxu0 %v54
    %190 = vmatprep.subr.mxu0 0.0
    %191 = vmatpush2.msra.mxu0 %v53
    %192 = vmatprep.subr.mxu0 0.0
    %193 = vmatpush2.msra.mxu0 %v52
    %194 = vmatprep.subr.mxu0 0.0
    %195 = vmatpush2.msra.mxu0 %v51
    %196 = vmatprep.subr.mxu0 0.0
    %197 = vmatpush2.msra.mxu0 %v50
    %198 = vmatprep.mubr.f32.mxu0 %v125
    %199 = vmatmul.mubr.f32.gmra.mxu0 %v124
    %v200 = vpop.f32.mrf.mxu0
    %v201 = vadd.f32 %v87, %v200
    %v202 = vpop.f32.mrf.mxu0
    %203 = vdwg.mxu0
    %204 = vmatprep.subr.mxu0 0.0
    %205 = vmatpush1.msra.mxu0 %v81
    %206 = vmatprep.subr.mxu0 0.0
    %207 = vmatpush1.msra.mxu0 %v80
    %208 = vmatprep.subr.mxu0 0.0
    %209 = vmatpush1.msra.mxu0 %v79
    %210 = vmatprep.subr.mxu0 0.0
    %211 = vmatpush1.msra.mxu0 %v78
    %212 = vmatprep.subr.mxu0 0.0
    %213 = vmatpush1.msra.mxu0 %v77
    %214 = vmatprep.subr.mxu0 0.0
    %215 = vmatpush1.msra.mxu0 %v76
    %216 = vmatprep.subr.mxu0 0.0
    %217 = vmatpush1.msra.mxu0 %v75
    %218 = vmatprep.subr.mxu0 0.0
    %219 = vmatpush1.msra.mxu0 %v74
    %220 = vmatprep.subr.mxu0 0.0
    %221 = vmatpush1.msra.mxu0 %v73
    %222 = vmatprep.subr.mxu0 0.0
    %223 = vmatpush1.msra.mxu0 %v72
    %224 = vmatprep.subr.mxu0 0.0
    %225 = vmatpush1.msra.mxu0 %v71
    %226 = vmatprep.subr.mxu0 0.0
    %227 = vmatpush1.msra.mxu0 %v70
    %228 = vmatprep.subr.mxu0 0.0
    %229 = vmatpush1.msra.mxu0 %v69
    %230 = vmatprep.subr.mxu0 0.0
    %231 = vmatpush1.msra.mxu0 %v68
    %232 = vmatprep.subr.mxu0 0.0
    %233 = vmatpush1.msra.mxu0 %v67
    %234 = vmatprep.subr.mxu0 0.0
    %235 = vmatpush1.msra.mxu0 %v66
    %236 = vmatprep.subr.mxu0 0.0
    %237 = vmatpush2.msra.mxu0 0.0
    %238 = vmatprep.subr.mxu0 0.0
    %239 = vmatpush2.msra.mxu0 0.0
    %240 = vmatprep.subr.mxu0 0.0
    %241 = vmatpush2.msra.mxu0 0.0
    %242 = vmatprep.subr.mxu0 0.0
    %243 = vmatpush2.msra.mxu0 0.0
    %244 = vmatprep.subr.mxu0 0.0
    %245 = vmatpush2.msra.mxu0 0.0
    %246 = vmatprep.subr.mxu0 0.0
    %247 = vmatpush2.msra.mxu0 0.0
    %248 = vmatprep.subr.mxu0 0.0
    %249 = vmatpush2.msra.mxu0 0.0
    %250 = vmatprep.subr.mxu0 0.0
    %251 = vmatpush2.msra.mxu0 0.0
    %252 = vmatprep.subr.mxu0 0.0
    %253 = vmatpush2.msra.mxu0 0.0
    %254 = vmatprep.subr.mxu0 0.0
    %255 = vmatpush2.msra.mxu0 0.0
    %256 = vmatprep.subr.mxu0 0.0
    %257 = vmatpush2.msra.mxu0 0.0
    %258 = vmatprep.subr.mxu0 0.0
    %259 = vmatpush2.msra.mxu0 0.0
    %260 = vmatprep.subr.mxu0 0.0
    %261 = vmatpush2.msra.mxu0 0.0
    %262 = vmatprep.subr.mxu0 0.0
    %263 = vmatpush2.msra.mxu0 0.0
    %264 = vmatprep.subr.mxu0 0.0
    %265 = vmatpush2.msra.mxu0 %v83
    %266 = vmatprep.subr.mxu0 0.0
    %267 = vmatpush2.msra.mxu0 %v82
    %268 = vmatprep.mubr.f32.mxu0 %v132
    %269 = vmatmul.mubr.f32.gmra.mxu0 %v126
    %v270 = vpop.f32.mrf.mxu0
    %v271 = vadd.f32 %v201, %v270
    %v272 = vpop.f32.mrf.mxu0
    %273 = vdwg.mxu0
    %v274 = vmax.f32 %v271, 0.0
    %v275 = vld [vmem:[#allocation2 + $0x190] sm:$0xff]
    %v276 = vld [vmem:[#allocation2 + $0x198] sm:$0xff]
    %v277 = vld [vmem:[#allocation2 + $0x1a0] sm:$0xff]
    %v278 = vld [vmem:[#allocation2 + $0x1a8] sm:$0xff]
    %v279 = vld [vmem:[#allocation2 + $0x1b0] sm:$0xff]
    %v280 = vld [vmem:[#allocation2 + $0x1b8] sm:$0xff]
    %v281 = vld [vmem:[#allocation2 + $0x1c0] sm:$0xff]
    %v282 = vld [vmem:[#allocation2 + $0x1c8] sm:$0xff]
    %v283 = vld [vmem:[#allocation2 + $0x1d0] sm:$0xff]
    %v284 = vld [vmem:[#allocation2 + $0x1d8] sm:$0xff]
    %v285 = vld [vmem:[#allocation2 + $0x1e0] sm:$0xff]
    %v286 = vld [vmem:[#allocation2 + $0x1e8] sm:$0xff]
    %v287 = vld [vmem:[#allocation2 + $0x1f0] sm:$0xff]
    %v288 = vld [vmem:[#allocation2 + $0x1f8] sm:$0xff]
    %v289 = vld [vmem:[#allocation2 + $0x200] sm:$0xff]
    %v290 = vld [vmem:[#allocation2 + $0x208] sm:$0xff]
    %v291 = vlaneseq
    %v292 = vshrl.u32 %v291, 7
    %v293 = vsub.s32 1, %v292
    %v294 = vrot.slane %v33, %v293
    %295 = vmatprep.subr.mxu0 0.0
    %296 = vmatpush1.msra.mxu0 %v290
    %297 = vmatprep.subr.mxu0 0.0
    %298 = vmatpush1.msra.mxu0 %v289
    %299 = vmatprep.subr.mxu0 0.0
    %300 = vmatpush1.msra.mxu0 %v288
    %301 = vmatprep.subr.mxu0 0.0
    %302 = vmatpush1.msra.mxu0 %v287
    %303 = vmatprep.subr.mxu0 0.0
    %304 = vmatpush1.msra.mxu0 %v286
    %305 = vmatprep.subr.mxu0 0.0
    %306 = vmatpush1.msra.mxu0 %v285
    %307 = vmatprep.subr.mxu0 0.0
    %308 = vmatpush1.msra.mxu0 %v284
    %309 = vmatprep.subr.mxu0 0.0
    %310 = vmatpush1.msra.mxu0 %v283
    %311 = vmatprep.subr.mxu0 0.0
    %312 = vmatpush1.msra.mxu0 %v282
    %313 = vmatprep.subr.mxu0 0.0
    %314 = vmatpush1.msra.mxu0 %v281
    %315 = vmatprep.subr.mxu0 0.0
    %316 = vmatpush1.msra.mxu0 %v280
    %317 = vmatprep.subr.mxu0 0.0
    %318 = vmatpush1.msra.mxu0 %v279
    %319 = vmatprep.subr.mxu0 0.0
    %320 = vmatpush1.msra.mxu0 %v278
    %321 = vmatprep.subr.mxu0 0.0
    %322 = vmatpush1.msra.mxu0 %v277
    %323 = vmatprep.subr.mxu0 0.0
    %324 = vmatpush1.msra.mxu0 %v276
    %325 = vmatprep.subr.mxu0 0.0
    %326 = vmatpush1.msra.mxu0 %v275
    %327 = vmatprep.subr.mxu0 0.0
    %328 = vmatpush2.msra.mxu0 0.0
    %329 = vmatprep.subr.mxu0 0.0
    %330 = vmatpush2.msra.mxu0 0.0
    %331 = vmatprep.subr.mxu0 0.0
    %332 = vmatpush2.msra.mxu0 0.0
    %333 = vmatprep.subr.mxu0 0.0
    %334 = vmatpush2.msra.mxu0 0.0
    %335 = vmatprep.subr.mxu0 0.0
    %336 = vmatpush2.msra.mxu0 0.0
    %337 = vmatprep.subr.mxu0 0.0
    %338 = vmatpush2.msra.mxu0 0.0
    %339 = vmatprep.subr.mxu0 0.0
    %340 = vmatpush2.msra.mxu0 0.0
    %341 = vmatprep.subr.mxu0 0.0
    %342 = vmatpush2.msra.mxu0 0.0
    %343 = vmatprep.subr.mxu0 0.0
    %344 = vmatpush2.msra.mxu0 0.0
    %345 = vmatprep.subr.mxu0 0.0
    %346 = vmatpush2.msra.mxu0 0.0
    %347 = vmatprep.subr.mxu0 0.0
    %348 = vmatpush2.msra.mxu0 0.0
    %349 = vmatprep.subr.mxu0 0.0
    %350 = vmatpush2.msra.mxu0 0.0
    %351 = vmatprep.subr.mxu0 0.0
    %352 = vmatpush2.msra.mxu0 0.0
    %353 = vmatprep.subr.mxu0 0.0
    %354 = vmatpush2.msra.mxu0 0.0
    %355 = vmatprep.subr.mxu0 0.0
    %356 = vmatpush2.msra.mxu0 0.0
    %357 = vmatprep.subr.mxu0 0.0
    %358 = vmatpush2.msra.mxu0 0.0
    %359 = vmatprep.mubr.f32.mxu0 0.0
    %360 = vmatmul.mubr.f32.gmra.mxu0 %v274
    %v361 = vpop.f32.mrf.mxu0
    %v362 = vadd.f32 %v294, %v361
    %v363 = vpop.f32.mrf.mxu0
    %364 = vdwg.mxu0
    %v365 = vmax.f32 %v362, 0.0
    %v366 = vld [vmem:[#allocation2 + $0x210] sm:$0xff]
    %v367 = vld [vmem:[#allocation2 + $0x218] sm:$0xff]
    %v368 = vld [vmem:[#allocation2 + $0x220] sm:$0xff]
    %v369 = vld [vmem:[#allocation2 + $0x228] sm:$0xff]
    %v370 = vld [vmem:[#allocation2 + $0x230] sm:$0xff]
    %v371 = vld [vmem:[#allocation2 + $0x238] sm:$0xff]
    %v372 = vld [vmem:[#allocation2 + $0x240] sm:$0xff]
    %v373 = vld [vmem:[#allocation2 + $0x248] sm:$0xff]
    %v374 = vld [vmem:[#allocation2 + $0x250] sm:$0xff]
    %v375 = vld [vmem:[#allocation2 + $0x258] sm:$0xff]
    %v376 = vld [vmem:[#allocation2 + $0x260] sm:$0xff]
    %v377 = vld [vmem:[#allocation2 + $0x268] sm:$0xff]
    %v378 = vld [vmem:[#allocation2 + $0x270] sm:$0xff]
    %v379 = vld [vmem:[#allocation2 + $0x278] sm:$0xff]
    %v380 = vld [vmem:[#allocation2 + $0x280] sm:$0xff]
    %v381 = vld [vmem:[#allocation2 + $0x288] sm:$0xff]
    %v382 = vlaneseq
    %v383 = vshrl.u32 %v382, 7
    %v384 = vsub.s32 2, %v383
    %v385 = vrot.slane %v33, %v384
    %386 = vmatprep.subr.mxu0 0.0
    %387 = vmatpush1.msra.mxu0 %v381
    %388 = vmatprep.subr.mxu0 0.0
    %389 = vmatpush1.msra.mxu0 %v380
    %390 = vmatprep.subr.mxu0 0.0
    %391 = vmatpush1.msra.mxu0 %v379
    %392 = vmatprep.subr.mxu0 0.0
    %393 = vmatpush1.msra.mxu0 %v378
    %394 = vmatprep.subr.mxu0 0.0
    %395 = vmatpush1.msra.mxu0 %v377
    %396 = vmatprep.subr.mxu0 0.0
    %397 = vmatpush1.msra.mxu0 %v376
    %398 = vmatprep.subr.mxu0 0.0
    %399 = vmatpush1.msra.mxu0 %v375
    %400 = vmatprep.subr.mxu0 0.0
    %401 = vmatpush1.msra.mxu0 %v374
    %402 = vmatprep.subr.mxu0 0.0
    %403 = vmatpush1.msra.mxu0 %v373
    %404 = vmatprep.subr.mxu0 0.0
    %405 = vmatpush1.msra.mxu0 %v372
    %406 = vmatprep.subr.mxu0 0.0
    %407 = vmatpush1.msra.mxu0 %v371
    %408 = vmatprep.subr.mxu0 0.0
    %409 = vmatpush1.msra.mxu0 %v370
    %410 = vmatprep.subr.mxu0 0.0
    %411 = vmatpush1.msra.mxu0 %v369
    %412 = vmatprep.subr.mxu0 0.0
    %413 = vmatpush1.msra.mxu0 %v368
    %414 = vmatprep.subr.mxu0 0.0
    %415 = vmatpush1.msra.mxu0 %v367
    %416 = vmatprep.subr.mxu0 0.0
    %417 = vmatpush1.msra.mxu0 %v366
    %418 = vmatprep.subr.mxu0 0.0
    %419 = vmatpush2.msra.mxu0 0.0
    %420 = vmatprep.subr.mxu0 0.0
    %421 = vmatpush2.msra.mxu0 0.0
    %422 = vmatprep.subr.mxu0 0.0
    %423 = vmatpush2.msra.mxu0 0.0
    %424 = vmatprep.subr.mxu0 0.0
    %425 = vmatpush2.msra.mxu0 0.0
    %426 = vmatprep.subr.mxu0 0.0
    %427 = vmatpush2.msra.mxu0 0.0
    %428 = vmatprep.subr.mxu0 0.0
    %429 = vmatpush2.msra.mxu0 0.0
    %430 = vmatprep.subr.mxu0 0.0
    %431 = vmatpush2.msra.mxu0 0.0
    %432 = vmatprep.subr.mxu0 0.0
    %433 = vmatpush2.msra.mxu0 0.0
    %434 = vmatprep.subr.mxu0 0.0
    %435 = vmatpush2.msra.mxu0 0.0
    %436 = vmatprep.subr.mxu0 0.0
    %437 = vmatpush2.msra.mxu0 0.0
    %438 = vmatprep.subr.mxu0 0.0
    %439 = vmatpush2.msra.mxu0 0.0
    %440 = vmatprep.subr.mxu0 0.0
    %441 = vmatpush2.msra.mxu0 0.0
    %442 = vmatprep.subr.mxu0 0.0
    %443 = vmatpush2.msra.mxu0 0.0
    %444 = vmatprep.subr.mxu0 0.0
    %445 = vmatpush2.msra.mxu0 0.0
    %446 = vmatprep.subr.mxu0 0.0
    %447 = vmatpush2.msra.mxu0 0.0
    %448 = vmatprep.subr.mxu0 0.0
    %449 = vmatpush2.msra.mxu0 0.0
    %450 = vmatprep.mubr.f32.mxu0 0.0
    %451 = vmatmul.mubr.f32.gmra.mxu0 %v365
    %v452 = vpop.f32.mrf.mxu0
    %v453 = vadd.f32 %v385, %v452
    %v454 = vpop.f32.mrf.mxu0
    %455 = vdwg.mxu0
    %v456 = vpack.c.bf16 %v453, %v453
    %v459 = vunpack.c.l.s4 1966171168
    %v460 = vunpack.c.0.s8 %v459
    %v461 = vlaneseq
    %v462 = vshrl.u32 %v461, 7
    %v463 = vsub.s32 %v460, %v462
    %v464 = vrot.slane %v456, %v463
    %v465 = vcombine.high %v464, %v464
    %v467 = vunpack.c.l.s4 1966171168
    %v468 = vunpack.c.0.s8 %v467
    %v469 = vlaneseq
    %v470 = vshrl.u32 %v469, 7
    %v471 = vsub.s32 %v468, %v470
    %v472 = vrot.slane %v464, %v471
    %v474 = vunpack.c.l.s4 1966171168
    %v475 = vunpack.c.0.s8 %v474
    %v476 = vlaneseq
    %v477 = vshrl.u32 %v476, 7
    %v478 = vsub.s32 %v475, %v477
    %v479 = vrot.slane %v465, %v478
    %v480 = vcombine.high %v472, %v472
    %v481 = vcombine.high %v479, %v479
    %486 = vst [vmem:[#allocation5] sm:$0x1] %v472
    %487 = vst [vmem:[#allocation5 + $0x1] sm:$0x1] %v479
    %488 = vst [vmem:[#allocation5 + $0x2] sm:$0x1] %v480
    %489 = vst [vmem:[#allocation5 + $0x3] sm:$0x1] %v481
    // Predicated region
    $region18: #{smallcnn_forward_padded.1} parent=1 // pred_check
      _
    $region19: #{smallcnn_forward_padded.1} parent=1 // pred_check_branch
      %491 = sbr.rel (0) target = $region21
    $region20: #{smallcnn_forward_padded.1} parent=1 // pred_region
      %s493 = ssub.s32 64, 16
      %494 = vsyncadd [#allocation4], %s493
      %s495 = sshll.u32 [#allocation5], 4
      %s496 = int_to_ptr.vmem [resolvable:$true] %s495
      %501 = dma.vmem_to_hbm [thread:$0]  %s496, 16, %s3, [#allocation4], 16, 16, 1
    $region21: #{smallcnn_forward_padded.1} parent=1 // pred_fallthru
      _
    // Predicated region
    $region22: #{smallcnn_forward_padded.1} parent=1 // pred_check
      _
    $region23: #{smallcnn_forward_padded.1} parent=1 // pred_check_branch
      %503 = sbr.rel (0) target = $region25
    $region24: #{smallcnn_forward_padded.1} parent=1 // pred_region
      %504 = dma.done [#allocation4], 64
    $region25: #{smallcnn_forward_padded.1} parent=1 // pred_fallthru
      _
    %505 = vsyncpa [#allocation3], 1
    %506 = vsyncpa [#allocation4], 1

</llo_original>
